<compile_context>
chip_gen: v6e
topology: v6e:2x2x1
jax: 0.10.0
libtpu: 0.0.40
codegen_flags: <defaults>
</compile_context>

<pallas_src>
import functools

import jax
import jax.numpy as jnp
from jax.experimental import pallas as pl
from jax.experimental.pallas import tpu as pltpu


def _film_kernel(x_ref, cond_ref, w_ref, b_ref, out_ref, *, ct, cc):
    # x_ref:    (1, Ct, TW)   feature tile (channels = sublanes, pixels = lanes)
    # cond_ref: (1, Cc, TW)   conditioning tile
    # w_ref:    (2*Ct, Cc)    stacked [wg; wb] 1x1-conv weights (fused)
    # b_ref:    (2*Ct, 1)     stacked [bg; bb] biases
    # out_ref:  (1, Ct, TW)
    cond = cond_ref[0].astype(jnp.float32)             # (Cc, TW)
    w = w_ref[...].astype(jnp.float32)                 # (2Ct, Cc)
    b = b_ref[...].astype(jnp.float32)                 # (2Ct, 1)

    if cc <= 8:
        # K=Cc matmul would be <3% MXU-utilized; this kernel is memory-bound so
        # the VPU has ample slack -> unrolled broadcast FMAs, no MXU push/pop
        # latency on the short critical path of small grids.
        acc = w[:, 0:1] * cond[0:1, :]
        for c in range(1, cc):
            acc = acc + w[:, c:c + 1] * cond[c:c + 1, :]
        gb = acc + b                                    # (2Ct, TW)
    else:
        gb = jnp.dot(w, cond, preferred_element_type=jnp.float32) + b

    gamma = gb[:ct]                                     # (Ct, TW)
    beta = gb[ct:]                                      # (Ct, TW)
    y = x_ref[0].astype(jnp.float32) * (1.0 + jnp.tanh(gamma)) + beta
    out_ref[0] = y.astype(out_ref.dtype)


def _round_up(x: int, m: int) -> int:
    return ((x + m - 1) // m) * m


def _pick_lane_tile(hw: int, ct: int, cc: int, in_bytes: int, out_bytes: int,
                    budget_bytes: int = 28 * 1024 * 1024, cap: int = 32768) -> int:
    """VMEM-budget-aware lane tile (multiple of 128; tail handled by cdiv grid)."""
    if hw <= 128:
        return hw                                       # full extent: always legal
    # VMEM bytes per lane of TW:
    #   double-buffered pipelined blocks: 2*(Ct + Cc)*in + 2*Ct*out
    #   in-kernel f32 temporaries (cond, gb, gamma/beta/y): ~(Cc + 6*Ct)*4
    per_lane = 2 * (ct + cc) * in_bytes + 2 * ct * out_bytes + (cc + 6 * ct) * 4
    tw = budget_bytes // per_lane
    tw = min(tw, cap, (hw // 128) * 128)
    return max(128, (tw // 128) * 128)


def film(x_nchw, cond_nchw, wg, bg, wb, bb):
    """FiLM forward (PyTorch-facing, NCHW in / NCHW out).

    x_nchw:    (N, Ct, H, W)   feature map to modulate
    cond_nchw: (N, Cc, H, W)   conditioning feature map (same H, W)
    wg, wb:    (Ct, Cc, 1, 1)  PyTorch Conv2d weights (kernel_size=1)
    bg, bb:    (Ct,)           PyTorch Conv2d biases
    """
    # TODO(synk): kernel_size > 1 (padded KxK conv for gamma/beta) not
    # implemented; the module's default (and intended) kernel_size is 1.
    N, Ct, H, W = x_nchw.shape
    Cc = cond_nchw.shape[1]
    HW = H * W

    # NCHW -> (N, C, H*W): free row-major view, no transpose / extra HBM pass.
    x2 = x_nchw.reshape(N, Ct, HW)
    c2 = cond_nchw.reshape(N, Cc, HW)
    # Fuse the two 1x1 convs: one stacked weight/bias -> one contraction/tile.
    w2 = jnp.concatenate([wg.reshape(Ct, Cc), wb.reshape(Ct, Cc)], axis=0)  # (2Ct, Cc)
    b2 = jnp.concatenate([bg.reshape(Ct, 1), bb.reshape(Ct, 1)], axis=0)    # (2Ct, 1)

    in_bytes = max(x_nchw.dtype.itemsize, cond_nchw.dtype.itemsize)
    TW = _pick_lane_tile(HW, Ct, Cc, in_bytes, x_nchw.dtype.itemsize)
    num_tiles = pl.cdiv(HW, TW)

    # Guarantee >= 2 program points when possible so both v7x TensorCores work.
    if N == 1 and num_tiles == 1 and HW > 256:
        TW = max(128, _round_up(pl.cdiv(HW, 2), 128))
        num_tiles = pl.cdiv(HW, TW)

    # Put the longer axis first for better megacore work balance.
    if num_tiles >= N:
        grid = (num_tiles, N)
        tile_map = lambda j, n: (n, 0, j)
        const_map = lambda j, n: (0, 0)
    else:
        grid = (N, num_tiles)
        tile_map = lambda n, j: (n, 0, j)
        const_map = lambda n, j: (0, 0)

    kernel = functools.partial(_film_kernel, ct=Ct, cc=Cc)

    out = pl.pallas_call(
        kernel,
        out_shape=jax.ShapeDtypeStruct((N, Ct, HW), x_nchw.dtype),
        grid_spec=pltpu.PrefetchScalarGridSpec(
            num_scalar_prefetch=0,
            grid=grid,
            in_specs=[
                pl.BlockSpec((1, Ct, TW), tile_map),
                pl.BlockSpec((1, Cc, TW), tile_map),
                pl.BlockSpec((2 * Ct, Cc), const_map),
                pl.BlockSpec((2 * Ct, 1), const_map),
            ],
            out_specs=pl.BlockSpec((1, Ct, TW), tile_map),
        ),
        compiler_params=pltpu.CompilerParams(
            dimension_semantics=("parallel", "parallel"),
            vmem_limit_bytes=48 * 1024 * 1024,
        ),
    )(x2, c2, w2, b2)
    return out.reshape(N, Ct, H, W)


# ------------------------- pure-JAX reference for checking -------------------------
def film_ref(x, cond, wg, bg, wb, bb):
    wgm = wg.reshape(wg.shape[0], wg.shape[1])
    wbm = wb.reshape(wb.shape[0], wb.shape[1])
    g = jnp.einsum('nchw,oc->nohw', cond, wgm) + bg[None, :, None, None]
    b = jnp.einsum('nchw,oc->nohw', cond, wbm) + bb[None, :, None, None]
    return x * (1.0 + jnp.tanh(g)) + b


def _check(key, N, Cc, Ct, H, W):
    k = jax.random.split(key, 6)
    x = jax.random.normal(k[0], (N, Ct, H, W), jnp.float32)
    cond = jax.random.normal(k[1], (N, Cc, H, W), jnp.float32)
    wg = 0.2 * jax.random.normal(k[2], (Ct, Cc, 1, 1), jnp.float32)
    bg = 0.1 * jax.random.normal(k[3], (Ct,), jnp.float32)
    wb = 0.2 * jax.random.normal(k[4], (Ct, Cc, 1, 1), jnp.float32)
    bb = 0.1 * jax.random.normal(k[5], (Ct,), jnp.float32)

    out = jax.block_until_ready(film(x, cond, wg, bg, wb, bb))
    ref = film_ref(x, cond, wg, bg, wb, bb)
    assert out.shape == (N, Ct, H, W)
    err = float(jnp.max(jnp.abs(out - ref)))
    assert jnp.allclose(out, ref, atol=1e-5, rtol=1e-5), f"max abs err {err}"


if __name__ == "__main__":
    key = jax.random.PRNGKey(0)
    keys = jax.random.split(key, 3)
    # Primary small case (matches module intent: cond_ch=4, target_ch=16).
    _check(keys[0], N=2, Cc=4, Ct=16, H=16, W=16)
    # HW not a multiple of 128 -> exercises cdiv grid with masked tail block.
    _check(keys[1], N=1, Cc=4, Ct=16, H=10, W=13)
    # Larger Cc -> exercises the fused single-matmul (MXU) path.
    _check(keys[2], N=1, Cc=64, Ct=32, H=12, W=12)
    print("KERNEL_OK")
</pallas_src>

<mosaic_0001>
module attributes {stable_mosaic.version = 11 : i64} {
  func.func @_film_kernel(%arg0: i32, %arg1: i32, %arg2: memref<1x16x256xf32, #tpu.memory_space<vmem>>, %arg3: memref<1x4x256xf32, #tpu.memory_space<vmem>>, %arg4: memref<32x4xf32, #tpu.memory_space<vmem>>, %arg5: memref<32x1xf32, #tpu.memory_space<vmem>>, %arg6: memref<1x16x256xf32, #tpu.memory_space<vmem>>) attributes {dimension_semantics = [#tpu.dimension_semantics<parallel>, #tpu.dimension_semantics<parallel>], iteration_bounds = array<i64: 2, 1>, scalar_prefetch = 0 : i64, scratch_operands = 0 : i64, tpu.core_type = #tpu.core_type<tc>, window_params = [{transform_indices = @transform_0, window_bounds = array<i64: 1, 16, 256>}, {transform_indices = @transform_1, window_bounds = array<i64: 1, 4, 256>}, {pipeline_mode = #tpu.pipeline_mode<synchronous>, transform_indices = @transform_2, window_bounds = array<i64: 32, 4>}, {pipeline_mode = #tpu.pipeline_mode<synchronous>, transform_indices = @transform_3, window_bounds = array<i64: 32, 1>}, {transform_indices = @transform_4, window_bounds = array<i64: 1, 16, 256>}]} {
    %c0 = arith.constant 0 : index
    %c0_0 = arith.constant 0 : index
    %c0_1 = arith.constant 0 : index
    %0 = vector.load %arg3[%c0, %c0_0, %c0_1] : memref<1x4x256xf32, #tpu.memory_space<vmem>>, vector<1x4x256xf32>
    %1 = vector.shape_cast %0 : vector<1x4x256xf32> to vector<4x256xf32>
    %c0_2 = arith.constant 0 : index
    %c0_3 = arith.constant 0 : index
    %2 = vector.load %arg4[%c0_2, %c0_3] : memref<32x4xf32, #tpu.memory_space<vmem>>, vector<32x4xf32>
    %c0_4 = arith.constant 0 : index
    %c0_5 = arith.constant 0 : index
    %3 = vector.load %arg5[%c0_4, %c0_5] : memref<32x1xf32, #tpu.memory_space<vmem>>, vector<32x1xf32>
    %4 = vector.extract_strided_slice %2 {offsets = [0, 0], sizes = [32, 1], strides = [1, 1]} : vector<32x4xf32> to vector<32x1xf32>
    %5 = vector.extract_strided_slice %1 {offsets = [0, 0], sizes = [1, 256], strides = [1, 1]} : vector<4x256xf32> to vector<1x256xf32>
    %6 = vector.broadcast %4 : vector<32x1xf32> to vector<32x256xf32>
    %7 = vector.broadcast %5 : vector<1x256xf32> to vector<32x256xf32>
    %8 = arith.mulf %6, %7 : vector<32x256xf32>
    %9 = vector.extract_strided_slice %2 {offsets = [0, 1], sizes = [32, 1], strides = [1, 1]} : vector<32x4xf32> to vector<32x1xf32>
    %10 = vector.extract_strided_slice %1 {offsets = [1, 0], sizes = [1, 256], strides = [1, 1]} : vector<4x256xf32> to vector<1x256xf32>
    %11 = vector.broadcast %9 : vector<32x1xf32> to vector<32x256xf32>
    %12 = vector.broadcast %10 : vector<1x256xf32> to vector<32x256xf32>
    %13 = arith.mulf %11, %12 : vector<32x256xf32>
    %14 = arith.addf %8, %13 : vector<32x256xf32>
    %15 = vector.extract_strided_slice %2 {offsets = [0, 2], sizes = [32, 1], strides = [1, 1]} : vector<32x4xf32> to vector<32x1xf32>
    %16 = vector.extract_strided_slice %1 {offsets = [2, 0], sizes = [1, 256], strides = [1, 1]} : vector<4x256xf32> to vector<1x256xf32>
    %17 = vector.broadcast %15 : vector<32x1xf32> to vector<32x256xf32>
    %18 = vector.broadcast %16 : vector<1x256xf32> to vector<32x256xf32>
    %19 = arith.mulf %17, %18 : vector<32x256xf32>
    %20 = arith.addf %14, %19 : vector<32x256xf32>
    %21 = vector.extract_strided_slice %2 {offsets = [0, 3], sizes = [32, 1], strides = [1, 1]} : vector<32x4xf32> to vector<32x1xf32>
    %22 = vector.extract_strided_slice %1 {offsets = [3, 0], sizes = [1, 256], strides = [1, 1]} : vector<4x256xf32> to vector<1x256xf32>
    %23 = vector.broadcast %21 : vector<32x1xf32> to vector<32x256xf32>
    %24 = vector.broadcast %22 : vector<1x256xf32> to vector<32x256xf32>
    %25 = arith.mulf %23, %24 : vector<32x256xf32>
    %26 = arith.addf %20, %25 : vector<32x256xf32>
    %27 = vector.broadcast %3 : vector<32x1xf32> to vector<32x256xf32>
    %28 = arith.addf %26, %27 : vector<32x256xf32>
    %29 = vector.extract_strided_slice %28 {offsets = [0, 0], sizes = [16, 256], strides = [1, 1]} : vector<32x256xf32> to vector<16x256xf32>
    %30 = vector.extract_strided_slice %28 {offsets = [16, 0], sizes = [16, 256], strides = [1, 1]} : vector<32x256xf32> to vector<16x256xf32>
    %c0_6 = arith.constant 0 : index
    %c0_7 = arith.constant 0 : index
    %c0_8 = arith.constant 0 : index
    %31 = vector.load %arg2[%c0_6, %c0_7, %c0_8] : memref<1x16x256xf32, #tpu.memory_space<vmem>>, vector<1x16x256xf32>
    %32 = vector.shape_cast %31 : vector<1x16x256xf32> to vector<16x256xf32>
    %33 = math.tanh %29 : vector<16x256xf32>
    %cst = arith.constant 1.000000e+00 : f32
    %34 = vector.broadcast %cst : f32 to vector<16x256xf32>
    %35 = arith.addf %34, %33 : vector<16x256xf32>
    %36 = arith.mulf %32, %35 : vector<16x256xf32>
    %37 = arith.addf %36, %30 : vector<16x256xf32>
    %c0_9 = arith.constant 0 : index
    %c0_10 = arith.constant 0 : index
    %c0_11 = arith.constant 0 : index
    %38 = vector.load %arg6[%c0_9, %c0_10, %c0_11] : memref<1x16x256xf32, #tpu.memory_space<vmem>>, vector<1x16x256xf32>
    %39 = vector.shape_cast %38 : vector<1x16x256xf32> to vector<16x256xf32>
    %40 = vector.shape_cast %37 : vector<16x256xf32> to vector<1x16x256xf32>
    tpu.vector_store %arg6[%c0_9, %c0_10, %c0_11], %40 {strides = array<i32>} : memref<1x16x256xf32, #tpu.memory_space<vmem>>, vector<1x16x256xf32>,
    return
  }
  func.func @transform_0(%arg0: i32, %arg1: i32) -> (i32, i32, i32) {
    %c0_i32 = arith.constant 0 : i32
    %c0_i32_0 = arith.constant 0 : i32
    return %arg0, %c0_i32, %arg1 : i32, i32, i32
  }
  func.func @transform_1(%arg0: i32, %arg1: i32) -> (i32, i32, i32) {
    %c0_i32 = arith.constant 0 : i32
    %c0_i32_0 = arith.constant 0 : i32
    return %arg0, %c0_i32, %arg1 : i32, i32, i32
  }
  func.func @transform_2(%arg0: i32, %arg1: i32) -> (i32, i32) {
    %c0_i32 = arith.constant 0 : i32
    %c0_i32_0 = arith.constant 0 : i32
    %c0_i32_1 = arith.constant 0 : i32
    return %c0_i32, %c0_i32_0 : i32, i32
  }
  func.func @transform_3(%arg0: i32, %arg1: i32) -> (i32, i32) {
    %c0_i32 = arith.constant 0 : i32
    %c0_i32_0 = arith.constant 0 : i32
    %c0_i32_1 = arith.constant 0 : i32
    return %c0_i32, %c0_i32_0 : i32, i32
  }
  func.func @transform_4(%arg0: i32, %arg1: i32) -> (i32, i32, i32) {
    %c0_i32 = arith.constant 0 : i32
    %c0_i32_0 = arith.constant 0 : i32
    return %arg0, %c0_i32, %arg1 : i32, i32, i32
  }
}

</mosaic_0001>

<llo_original>
// kernel: tpu_custom_call.1
$region0: #{tpu_custom_call.1}
  #allocation0 [shape = 'u32[]', space=smem, size = 0x4, offset = 0x4, fixed_abs, tag = 'smem constant byte address 0x4 - core index']
  #allocation1 [shape = 'u32[144,128]{1,0:T(1,128)}', space=vmem, size = 0x12000, scoped, tag = 'internal scratch']
  %s0 = inlined_call_operand.vmem [shape: f32[2,16,256], index: 0, kind: input, shape index: {}]
  %s1 = inlined_call_operand.hbm [shape: f32[2,4,256], index: 1, kind: input, shape index: {}]
  %s2 = inlined_call_operand.vmem [shape: f32[32,4], index: 2, kind: input, shape index: {}]
  %s3 = inlined_call_operand.vmem [shape: f32[32,1], index: 3, kind: input, shape index: {}]
  %s4 = inlined_call_operand.hbm [shape: f32[2,16,256], index: 4, kind: output, shape index: {}]
  %s5 = sld [smem:[#allocation0]]
  $region53: #{tpu_custom_call.1} parent=0
    _
  %s7 = ssub.s32 1, %s5
  %s8 = scalar_select 0, %s7, %s5
  $region1: #{tpu_custom_call.1} parent=0
    #allocation2 [shape = 'u8[8192]{0}', space=vmem, size = 0x2000, scoped, tag = 'input window, operand 1']
    #allocation3 [shape = 's32[2]{0}', space=sflag, size = 0x8, scoped, tag = 'scoped memory for tpu_custom_call.1']
    #allocation4 [shape = 's32[2]{0}', space=sflag, size = 0x8, scoped, tag = 'scoped memory for tpu_custom_call.1']
    #allocation5 [shape = 'u8[32768]{0}', space=vmem, size = 0x8000, scoped, tag = 'output window, operand 0']
    %9 = vsyncpa [#allocation3], 0
    %s10 = scalar_lea.sflag [#allocation3], 1
    %11 = vsyncpa %s10, 0
    %12 = vsyncpa [#allocation4], 0
    %s13 = scalar_lea.sflag [#allocation4], 1
    %14 = vsyncpa %s13, 0
    loop: start=0, step=1, limit=4
    $region2: #{tpu_custom_call.1} parent=1 // loop_pre_header
      _
    $region3: #{tpu_custom_call.1} parent=1 // loop_header
      %s16 = sphi 0, %s20
      %p17 = scmp.ge.s32.totalorder %s16, 4
      %s23 = sphi 0, %s35
      %s24 = sphi 0, %s31
      %s25 = sphi 0, %s23
      %s26 = sphi 0, %s24
      %s27 = sphi 0, %s25
      %s28 = sphi 0, %s26
      %s40 = sphi 0, %s42
      %s43 = sphi 0, %s40
      %s44 = sphi 0, %s43
      %s60 = sphi 0, %s44
      %s68 = sphi 0, %s70
      %s71 = sphi 0, %s68
      %s72 = sphi 0, %s71
      %s88 = sphi 0, %s72
      %s92 = sphi 0, %s92
      %s94 = sphi 0, %s92
      %s95 = sphi 0, %s94
      %s109 = sphi 0, %s95
      %s113 = sphi 0, %s113
      %s115 = sphi 0, %s113
      %s116 = sphi 0, %s115
      %s130 = sphi 0, %s116
      %s138 = sphi 0, %s140
      %s141 = sphi 0, %s138
      %s142 = sphi 0, %s141
      %s158 = sphi 0, %s142
    $region4: #{tpu_custom_call.1} parent=1 // loop_header_branch
      %19 = sbr.rel (%p17) target = $region8
    $region5: #{tpu_custom_call.1} parent=1 // loop_body
      %s21 = ssub.s32 %s16, 1
      %s22 = ssub.s32 %s16, 2
      %s29 = sadd.s32 1, %s24
      %p30 = scmp.ge.s32.totalorder %s29, 1
      %s31 = scalar_select %p30, 0, %s29
      %s32 = sadd.s32 1, %s23
      %s33 = scalar_select %p30, %s32, %s23
      %p34 = scmp.ge.s32.totalorder %s33, 2
      %s35 = scalar_select %p34, 0, %s33
      %s36 = ssub.s32 %s23, %s35
      %s37 = ssub.s32 %s24, %s31
      %s38 = sor.u32 %s36, %s37
      %p39 = scmp.eq.s32.totalorder %s38, 0
      %s41 = sadd.s32 %s40, 1
      %s42 = scalar_select %p39, %s40, %s41
      %p45 = pneg %p39
      %p46 = scmp.eq.s32.totalorder %s16, 1
      %p47 = por %p45, %p46
      %p48 = scmp.ne.s32.totalorder %s40, %s43
      %p49 = scmp.eq.s32.totalorder %s16, 0
      %p50 = por %p48, %p49
      %p51 = scmp.ne.s32.totalorder %s40, %s43
      %p52 = scmp.eq.s32.totalorder %s21, 1
      %p53 = por %p51, %p52
      %p54 = scmp.ne.s32.totalorder %s43, %s44
      %p55 = scmp.eq.s32.totalorder %s21, 0
      %p56 = por %p54, %p55
      %p57 = scmp.ne.s32.totalorder %s43, %s44
      %p58 = scmp.eq.s32.totalorder %s22, 1
      %p59 = por %p57, %p58
      %p61 = scmp.ne.s32.totalorder %s44, %s60
      %p62 = scmp.eq.s32.totalorder %s22, 0
      %p63 = por %p61, %p62
      %s64 = ssub.s32 %s23, %s35
      %s65 = ssub.s32 %s24, %s31
      %s66 = sor.u32 %s64, %s65
      %p67 = scmp.eq.s32.totalorder %s66, 0
      %s69 = sadd.s32 %s68, 1
      %s70 = scalar_select %p67, %s68, %s69
      %p73 = pneg %p67
      %p74 = scmp.eq.s32.totalorder %s16, 1
      %p75 = por %p73, %p74
      %p76 = scmp.ne.s32.totalorder %s68, %s71
      %p77 = scmp.eq.s32.totalorder %s16, 0
      %p78 = por %p76, %p77
      %p79 = scmp.ne.s32.totalorder %s68, %s71
      %p80 = scmp.eq.s32.totalorder %s21, 1
      %p81 = por %p79, %p80
      %p82 = scmp.ne.s32.totalorder %s71, %s72
      %p83 = scmp.eq.s32.totalorder %s21, 0
      %p84 = por %p82, %p83
      %p85 = scmp.ne.s32.totalorder %s71, %s72
      %p86 = scmp.eq.s32.totalorder %s22, 1
      %p87 = por %p85, %p86
      %p89 = scmp.ne.s32.totalorder %s72, %s88
      %p90 = scmp.eq.s32.totalorder %s22, 0
      %p91 = por %p89, %p90
      %s93 = sadd.s32 %s92, 1
      %p96 = scmp.eq.s32.totalorder %s16, 1
      %p97 = scmp.ne.s32.totalorder %s92, %s94
      %p98 = scmp.eq.s32.totalorder %s16, 0
      %p99 = por %p97, %p98
      %p100 = scmp.ne.s32.totalorder %s92, %s94
      %p101 = scmp.eq.s32.totalorder %s21, 1
      %p102 = por %p100, %p101
      %p103 = scmp.ne.s32.totalorder %s94, %s95
      %p104 = scmp.eq.s32.totalorder %s21, 0
      %p105 = por %p103, %p104
      %p106 = scmp.ne.s32.totalorder %s94, %s95
      %p107 = scmp.eq.s32.totalorder %s22, 1
      %p108 = por %p106, %p107
      %p110 = scmp.ne.s32.totalorder %s95, %s109
      %p111 = scmp.eq.s32.totalorder %s22, 0
      %p112 = por %p110, %p111
      %s114 = sadd.s32 %s113, 1
      %p117 = scmp.eq.s32.totalorder %s16, 1
      %p118 = scmp.ne.s32.totalorder %s113, %s115
      %p119 = scmp.eq.s32.totalorder %s16, 0
      %p120 = por %p118, %p119
      %p121 = scmp.ne.s32.totalorder %s113, %s115
      %p122 = scmp.eq.s32.totalorder %s21, 1
      %p123 = por %p121, %p122
      %p124 = scmp.ne.s32.totalorder %s115, %s116
      %p125 = scmp.eq.s32.totalorder %s21, 0
      %p126 = por %p124, %p125
      %p127 = scmp.ne.s32.totalorder %s115, %s116
      %p128 = scmp.eq.s32.totalorder %s22, 1
      %p129 = por %p127, %p128
      %p131 = scmp.ne.s32.totalorder %s116, %s130
      %p132 = scmp.eq.s32.totalorder %s22, 0
      %p133 = por %p131, %p132
      %s134 = ssub.s32 %s23, %s35
      %s135 = ssub.s32 %s24, %s31
      %s136 = sor.u32 %s134, %s135
      %p137 = scmp.eq.s32.totalorder %s136, 0
      %s139 = sadd.s32 %s138, 1
      %s140 = scalar_select %p137, %s138, %s139
      %p143 = pneg %p137
      %p144 = scmp.eq.s32.totalorder %s16, 1
      %p145 = por %p143, %p144
      %p146 = scmp.ne.s32.totalorder %s138, %s141
      %p147 = scmp.eq.s32.totalorder %s16, 0
      %p148 = por %p146, %p147
      %p149 = scmp.ne.s32.totalorder %s138, %s141
      %p150 = scmp.eq.s32.totalorder %s21, 1
      %p151 = por %p149, %p150
      %p152 = scmp.ne.s32.totalorder %s141, %s142
      %p153 = scmp.eq.s32.totalorder %s21, 0
      %p154 = por %p152, %p153
      %p155 = scmp.ne.s32.totalorder %s141, %s142
      %p156 = scmp.eq.s32.totalorder %s22, 1
      %p157 = por %p155, %p156
      %p159 = scmp.ne.s32.totalorder %s142, %s158
      %p160 = scmp.eq.s32.totalorder %s22, 0
      %p161 = por %p159, %p160
      %p162 = scmp.le.s32.totalorder 1, %s16
      %p163 = scmp.lt.s32.totalorder %s16, 3
      %p164 = pnand %p162, %p163
      %p165 = pneg %p164
      // Predicated region
      $region9: #{tpu_custom_call.1} parent=5 // pred_check
        _
      $region10: #{tpu_custom_call.1} parent=5 // pred_check_branch
        %167 = sbr.rel (%p164) target = $region12
      $region11: #{tpu_custom_call.1} parent=5 // pred_region
        %s168 = ssub.s32 %s16, 1
        // Predicated region
        $region13: #{tpu_custom_call.1} parent=11 // pred_check
          %p169 = pneg %p105
        $region14: #{tpu_custom_call.1} parent=11 // pred_check_branch
          %171 = sbr.rel (%p169) target = $region16
        $region15: #{tpu_custom_call.1} parent=11 // pred_region
          _
        $region16: #{tpu_custom_call.1} parent=11 // pred_fallthru
          _
        // Predicated region
        $region17: #{tpu_custom_call.1} parent=11 // pred_check
          %p172 = pneg %p126
        $region18: #{tpu_custom_call.1} parent=11 // pred_check_branch
          %174 = sbr.rel (%p172) target = $region20
        $region19: #{tpu_custom_call.1} parent=11 // pred_region
          _
        $region20: #{tpu_custom_call.1} parent=11 // pred_fallthru
          _
      $region12: #{tpu_custom_call.1} parent=5 // pred_fallthru
        _
      %p175 = scmp.lt.s32.totalorder %s16, 2
      // Predicated region
      $region21: #{tpu_custom_call.1} parent=5 // pred_check
        %p176 = pneg %p175
      $region22: #{tpu_custom_call.1} parent=5 // pred_check_branch
        %178 = sbr.rel (%p176) target = $region24
      $region23: #{tpu_custom_call.1} parent=5 // pred_region
        // Predicated region
        $region25: #{tpu_custom_call.1} parent=23 // pred_check
          %p179 = pneg %p50
        $region26: #{tpu_custom_call.1} parent=23 // pred_check_branch
          %181 = sbr.rel (%p179) target = $region28
        $region27: #{tpu_custom_call.1} parent=23 // pred_region
          %s182 = smul.u32 2, %s24
          %p183 = scmp.lt.s32.totalorder %s23, 1
          %s184 = scalar_select %p183, %s23, 1
          %p185 = scmp.lt.s32.totalorder %s182, 1
          %s186 = scalar_select %p185, %s182, 1
          %s187 = smul.addr %s184, 4
          %s188 = sadd.s32 %s186, %s187
          %s189 = smul.addr %s188, 8
          %s190 = scalar_lea.vmem %s0, %s189
          %s191 = smul.u32 2, %s24
        $region28: #{tpu_custom_call.1} parent=23 // pred_fallthru
          _
        // Predicated region
        $region29: #{tpu_custom_call.1} parent=23 // pred_check
          %p192 = pneg %p78
        $region30: #{tpu_custom_call.1} parent=23 // pred_check_branch
          %194 = sbr.rel (%p192) target = $region32
        $region31: #{tpu_custom_call.1} parent=23 // pred_region
          %s195 = sand.u32 %s68, 1
          %s196 = scalar_lea.sflag [#allocation3], %s195
          %s197 = sand.u32 %s68, 1
          %s198 = smul.addr %s197, 8
          %s199 = scalar_lea.vmem [#allocation2], %s198
          %s200 = smul.u32 2, %s24
          %s202 = ssub.s32 128, 128
          %203 = vsyncadd %s196, %s202
          %s204 = smul.addr %s23, 2
          %s205 = sadd.s32 %s200, %s204
          %s206 = smul.addr %s205, 64
          %s207 = scalar_lea.hbm %s1, %s206
          %s209 = sshll.u32 %s199, 4
          %s210 = int_to_ptr.vmem [resolvable:$true] %s209
          %212 = dma.hbm_to_vmem [thread:$0]  %s207, 128, %s210, %s196
        $region32: #{tpu_custom_call.1} parent=23 // pred_fallthru
          _
      $region24: #{tpu_custom_call.1} parent=5 // pred_fallthru
        _
      %p213 = scmp.le.s32.totalorder 1, %s16
      %p214 = scmp.lt.s32.totalorder %s16, 3
      %p215 = pnand %p213, %p214
      %p216 = pneg %p215
      // Predicated region
      $region33: #{tpu_custom_call.1} parent=5 // pred_check
        _
      $region34: #{tpu_custom_call.1} parent=5 // pred_check_branch
        %218 = sbr.rel (%p215) target = $region36
      $region35: #{tpu_custom_call.1} parent=5 // pred_region
        %s219 = ssub.s32 %s16, 1
        %s220 = sand.u32 %s71, 1
        %s221 = scalar_lea.sflag [#allocation3], %s220
        %s222 = sand.u32 %s71, 1
        %s223 = smul.addr %s222, 8
        %s224 = scalar_lea.vmem [#allocation2], %s223
        // Predicated region
        $region37: #{tpu_custom_call.1} parent=35 // pred_check
          %p225 = pneg %p84
        $region38: #{tpu_custom_call.1} parent=35 // pred_check_branch
          %227 = sbr.rel (%p225) target = $region40
        $region39: #{tpu_custom_call.1} parent=35 // pred_region
          %228 = dma.done %s221, 128
        $region40: #{tpu_custom_call.1} parent=35 // pred_fallthru
          _
        %s229 = smul.u32 2, %s26
        %p230 = scmp.lt.s32.totalorder %s25, 1
        %s231 = scalar_select %p230, %s25, 1
        %p232 = scmp.lt.s32.totalorder %s229, 1
        %s233 = scalar_select %p232, %s229, 1
        %s234 = smul.addr %s231, 4
        %s235 = sadd.s32 %s233, %s234
        %s236 = smul.addr %s235, 8
        %s237 = scalar_lea.vmem %s0, %s236
        %p238 = pneg %p56
        %p239 = pneg %p53
        %s240 = sand.u32 %s71, 1
        %s241 = scalar_lea.sflag [#allocation3], %s240
        %s242 = sand.u32 %s71, 1
        %s243 = smul.addr %s242, 8
        %s244 = scalar_lea.vmem [#allocation2], %s243
        %p245 = pneg %p84
        %p246 = pneg %p81
        %p247 = pneg %p105
        %p248 = pneg %p102
        %p249 = pneg %p126
        %p250 = pneg %p123
        %p251 = pneg %p154
        %p252 = pneg %p151
        %s253 = sand.u32 %s141, 1
        %s254 = scalar_lea.sflag [#allocation4], %s253
        %s255 = sand.u32 %s141, 1
        %s256 = smul.addr %s255, 32
        %s257 = scalar_lea.vmem [#allocation5], %s256
        %s258 = smul.u32 2, %s26
        %p259 = scmp.lt.s32.totalorder %s25, 1
        %s260 = scalar_select %p259, %s25, 1
        %p261 = scmp.lt.s32.totalorder %s258, 1
        %s262 = scalar_select %p261, %s258, 1
        %s263 = smul.addr %s260, 4
        %s264 = sadd.s32 %s262, %s263
        %s265 = smul.addr %s264, 8
        %s266 = scalar_lea.vmem %s0, %s265
        %s267 = smul.u32 2, %s26
        %s268 = smul.u32 2, %s26
        %s269 = smul.u32 2, %s26
        %v270 = vld [vmem:[%s224] sm:$0xff]
        %v271 = vld [vmem:[%s2] sm:$0xff]
        %v272 = vld [vmem:[%s2 + $0x8] sm:$0xff]
        %v273 = vld [vmem:[%s2 + $0x10] sm:$0xff]
        %v274 = vld [vmem:[%s2 + $0x18] sm:$0xff]
        %v275 = vld [vmem:[%s3] sm:$0xff]
        %v276 = vld [vmem:[%s3 + $0x8] sm:$0xff]
        %v277 = vld [vmem:[%s3 + $0x10] sm:$0xff]
        %v278 = vld [vmem:[%s3 + $0x18] sm:$0xff]
        %280 = vset.pattern.permute.xlu0 0
        %281 = vperm.xlu0 %280, %v271
        %v282 = vpop.permute.xlu0 %281
        %285 = vset.pattern.permute.xlu0 0
        %286 = vperm.xlu0 %285, %v272
        %v287 = vpop.permute.xlu0 %286
        %290 = vset.pattern.permute.xlu0 0
        %291 = vperm.xlu0 %290, %v273
        %v292 = vpop.permute.xlu0 %291
        %295 = vset.pattern.permute.xlu0 0
        %296 = vperm.xlu0 %295, %v274
        %v297 = vpop.permute.xlu0 %296
        %v300 = vlaneseq
        %v301 = vshrl.u32 %v300, 7
        %v302 = vsub.s32 0, %v301
        %v303 = vrot.slane %v270, %v302
        %v304 = vlaneseq
        %v305 = vshrl.u32 %v304, 7
        %v306 = vsub.s32 4, %v305
        %v307 = vrot.slane %v270, %v306
        %v310 = vlaneseq
        %v311 = vshrl.u32 %v310, 7
        %v312 = vsub.s32 0, %v311
        %v313 = vrot.slane %v303, %v312
        %v314 = vlaneseq
        %v315 = vshrl.u32 %v314, 7
        %v316 = vsub.s32 0, %v315
        %v317 = vrot.slane %v307, %v316
        %v318 = vmul.f32 %v282, %v313
        %v319 = vmul.f32 %v282, %v317
        %v320 = vmul.f32 %v287, %v313
        %v321 = vmul.f32 %v287, %v317
        %v322 = vmul.f32 %v292, %v313
        %v323 = vmul.f32 %v292, %v317
        %v324 = vmul.f32 %v297, %v313
        %v325 = vmul.f32 %v297, %v317
        %326 = vset.pattern.permute.xlu0 1
        %327 = vperm.xlu0 %326, %v271
        %v328 = vpop.permute.xlu0 %327
        %330 = vset.pattern.permute.xlu0 1
        %331 = vperm.xlu0 %330, %v272
        %v332 = vpop.permute.xlu0 %331
        %334 = vset.pattern.permute.xlu0 1
        %335 = vperm.xlu0 %334, %v273
        %v336 = vpop.permute.xlu0 %335
        %338 = vset.pattern.permute.xlu0 1
        %339 = vperm.xlu0 %338, %v274
        %v340 = vpop.permute.xlu0 %339
        %v342 = vlaneseq
        %v343 = vshrl.u32 %v342, 7
        %v344 = vsub.s32 1, %v343
        %v345 = vrot.slane %v270, %v344
        %v346 = vlaneseq
        %v347 = vshrl.u32 %v346, 7
        %v348 = vsub.s32 5, %v347
        %v349 = vrot.slane %v270, %v348
        %v352 = vlaneseq
        %v353 = vshrl.u32 %v352, 7
        %v354 = vsub.s32 1, %v353
        %v355 = vrot.slane %v345, %v354
        %v356 = vlaneseq
        %v357 = vshrl.u32 %v356, 7
        %v358 = vsub.s32 1, %v357
        %v359 = vrot.slane %v349, %v358
        %v360 = vmul.f32 %v328, %v355
        %v361 = vmul.f32 %v328, %v359
        %v362 = vmul.f32 %v332, %v355
        %v363 = vmul.f32 %v332, %v359
        %v364 = vmul.f32 %v336, %v355
        %v365 = vmul.f32 %v336, %v359
        %v366 = vmul.f32 %v340, %v355
        %v367 = vmul.f32 %v340, %v359
        %v368 = vadd.f32 %v318, %v360
        %v369 = vadd.f32 %v319, %v361
        %v370 = vadd.f32 %v320, %v362
        %v371 = vadd.f32 %v321, %v363
        %v372 = vadd.f32 %v322, %v364
        %v373 = vadd.f32 %v323, %v365
        %v374 = vadd.f32 %v324, %v366
        %v375 = vadd.f32 %v325, %v367
        %376 = vset.pattern.permute.xlu0 2
        %377 = vperm.xlu0 %376, %v271
        %v378 = vpop.permute.xlu0 %377
        %380 = vset.pattern.permute.xlu0 2
        %381 = vperm.xlu0 %380, %v272
        %v382 = vpop.permute.xlu0 %381
        %384 = vset.pattern.permute.xlu0 2
        %385 = vperm.xlu0 %384, %v273
        %v386 = vpop.permute.xlu0 %385
        %388 = vset.pattern.permute.xlu0 2
        %389 = vperm.xlu0 %388, %v274
        %v390 = vpop.permute.xlu0 %389
        %v392 = vlaneseq
        %v393 = vshrl.u32 %v392, 7
        %v394 = vsub.s32 2, %v393
        %v395 = vrot.slane %v270, %v394
        %v396 = vlaneseq
        %v397 = vshrl.u32 %v396, 7
        %v398 = vsub.s32 6, %v397
        %v399 = vrot.slane %v270, %v398
        %v402 = vlaneseq
        %v403 = vshrl.u32 %v402, 7
        %v404 = vsub.s32 2, %v403
        %v405 = vrot.slane %v395, %v404
        %v406 = vlaneseq
        %v407 = vshrl.u32 %v406, 7
        %v408 = vsub.s32 2, %v407
        %v409 = vrot.slane %v399, %v408
        %v410 = vmul.f32 %v378, %v405
        %v411 = vmul.f32 %v378, %v409
        %v412 = vmul.f32 %v382, %v405
        %v413 = vmul.f32 %v382, %v409
        %v414 = vmul.f32 %v386, %v405
        %v415 = vmul.f32 %v386, %v409
        %v416 = vmul.f32 %v390, %v405
        %v417 = vmul.f32 %v390, %v409
        %v418 = vadd.f32 %v368, %v410
        %v419 = vadd.f32 %v369, %v411
        %v420 = vadd.f32 %v370, %v412
        %v421 = vadd.f32 %v371, %v413
        %v422 = vadd.f32 %v372, %v414
        %v423 = vadd.f32 %v373, %v415
        %v424 = vadd.f32 %v374, %v416
        %v425 = vadd.f32 %v375, %v417
        %426 = vset.pattern.permute.xlu0 3
        %427 = vperm.xlu0 %426, %v271
        %v428 = vpop.permute.xlu0 %427
        %430 = vset.pattern.permute.xlu0 3
        %431 = vperm.xlu0 %430, %v272
        %v432 = vpop.permute.xlu0 %431
        %434 = vset.pattern.permute.xlu0 3
        %435 = vperm.xlu0 %434, %v273
        %v436 = vpop.permute.xlu0 %435
        %438 = vset.pattern.permute.xlu0 3
        %439 = vperm.xlu0 %438, %v274
        %v440 = vpop.permute.xlu0 %439
        %v442 = vlaneseq
        %v443 = vshrl.u32 %v442, 7
        %v444 = vsub.s32 3, %v443
        %v445 = vrot.slane %v270, %v444
        %v446 = vlaneseq
        %v447 = vshrl.u32 %v446, 7
        %v448 = vsub.s32 7, %v447
        %v449 = vrot.slane %v270, %v448
        %v452 = vlaneseq
        %v453 = vshrl.u32 %v452, 7
        %v454 = vsub.s32 3, %v453
        %v455 = vrot.slane %v445, %v454
        %v456 = vlaneseq
        %v457 = vshrl.u32 %v456, 7
        %v458 = vsub.s32 3, %v457
        %v459 = vrot.slane %v449, %v458
        %v460 = vmul.f32 %v428, %v455
        %v461 = vmul.f32 %v428, %v459
        %v462 = vmul.f32 %v432, %v455
        %v463 = vmul.f32 %v432, %v459
        %v464 = vmul.f32 %v436, %v455
        %v465 = vmul.f32 %v436, %v459
        %v466 = vmul.f32 %v440, %v455
        %v467 = vmul.f32 %v440, %v459
        %v468 = vadd.f32 %v418, %v460
        %v469 = vadd.f32 %v419, %v461
        %v470 = vadd.f32 %v420, %v462
        %v471 = vadd.f32 %v421, %v463
        %v472 = vadd.f32 %v422, %v464
        %v473 = vadd.f32 %v423, %v465
        %v474 = vadd.f32 %v424, %v466
        %v475 = vadd.f32 %v425, %v467
        %477 = vset.pattern.permute.xlu0 0
        %478 = vperm.xlu0 %477, %v275
        %v479 = vpop.permute.xlu0 %478
        %482 = vset.pattern.permute.xlu0 0
        %483 = vperm.xlu0 %482, %v276
        %v484 = vpop.permute.xlu0 %483
        %487 = vset.pattern.permute.xlu0 0
        %488 = vperm.xlu0 %487, %v277
        %v489 = vpop.permute.xlu0 %488
        %492 = vset.pattern.permute.xlu0 0
        %493 = vperm.xlu0 %492, %v278
        %v494 = vpop.permute.xlu0 %493
        %v496 = vadd.f32 %v468, %v479
        %v497 = vadd.f32 %v469, %v479
        %v498 = vadd.f32 %v470, %v484
        %v499 = vadd.f32 %v471, %v484
        %v500 = vadd.f32 %v472, %v489
        %v501 = vadd.f32 %v473, %v489
        %v502 = vadd.f32 %v474, %v494
        %v503 = vadd.f32 %v475, %v494
        %v504 = vld [vmem:[%s266] sm:$0xff]
        %v505 = vld [vmem:[%s266 + $0x8] sm:$0xff]
        %v506 = vld [vmem:[%s266 + $0x10] sm:$0xff]
        %v507 = vld [vmem:[%s266 + $0x18] sm:$0xff]
        %v508 = vtanh.pop %v496
        %v509 = vtanh.pop %v497
        %v510 = vtanh.pop %v498
        %v511 = vtanh.pop %v499
        %v512 = vadd.f32 %v508, 1.0
        %v513 = vadd.f32 %v509, 1.0
        %v514 = vadd.f32 %v510, 1.0
        %v515 = vadd.f32 %v511, 1.0
        %v516 = vmul.f32 %v504, %v512
        %v517 = vmul.f32 %v505, %v513
        %v518 = vmul.f32 %v506, %v514
        %v519 = vmul.f32 %v507, %v515
        %v520 = vadd.f32 %v516, %v500
        %v521 = vadd.f32 %v517, %v501
        %v522 = vadd.f32 %v518, %v502
        %v523 = vadd.f32 %v519, %v503
        %524 = vst [vmem:[%s257] sm:$0xff] %v520
        %525 = vst [vmem:[%s257 + $0x8] sm:$0xff] %v521
        %526 = vst [vmem:[%s257 + $0x10] sm:$0xff] %v522
        %527 = vst [vmem:[%s257 + $0x18] sm:$0xff] %v523
        %s528 = sand.u32 %s141, 1
        %s529 = scalar_lea.sflag [#allocation4], %s528
        %s530 = sand.u32 %s141, 1
        %s531 = smul.addr %s530, 32
        %s532 = scalar_lea.vmem [#allocation5], %s531
        // Predicated region
        $region41: #{tpu_custom_call.1} parent=35 // pred_check
          %p533 = pneg %p151
        $region42: #{tpu_custom_call.1} parent=35 // pred_check_branch
          %535 = sbr.rel (%p533) target = $region44
        $region43: #{tpu_custom_call.1} parent=35 // pred_region
          %s536 = smul.u32 2, %s26
          %s538 = ssub.s32 512, 512
          %539 = vsyncadd %s529, %s538
          %s540 = smul.addr %s25, 4
          %s541 = sadd.s32 %s536, %s540
          %s542 = smul.addr %s541, 128
          %s543 = scalar_lea.hbm %s4, %s542
          %s544 = sshll.u32 %s532, 4
          %s545 = int_to_ptr.vmem [resolvable:$true] %s544
          %550 = dma.vmem_to_hbm [thread:$0]  %s545, 512, %s543, %s529, 256, 256, 16
        $region44: #{tpu_custom_call.1} parent=35 // pred_fallthru
          _
      $region36: #{tpu_custom_call.1} parent=5 // pred_fallthru
        _
      %p551 = scmp.le.s32.totalorder 2, %s16
      // Predicated region
      $region45: #{tpu_custom_call.1} parent=5 // pred_check
        %p552 = pneg %p551
      $region46: #{tpu_custom_call.1} parent=5 // pred_check_branch
        %554 = sbr.rel (%p552) target = $region48
      $region47: #{tpu_custom_call.1} parent=5 // pred_region
        %s555 = ssub.s32 %s16, 2
        // Predicated region
        $region49: #{tpu_custom_call.1} parent=47 // pred_check
          %p556 = pneg %p157
        $region50: #{tpu_custom_call.1} parent=47 // pred_check_branch
          %558 = sbr.rel (%p556) target = $region52
        $region51: #{tpu_custom_call.1} parent=47 // pred_region
          %s559 = sand.u32 %s142, 1
          %s560 = scalar_lea.sflag [#allocation4], %s559
          %s561 = sand.u32 %s142, 1
          %s562 = smul.addr %s561, 32
          %s563 = scalar_lea.vmem [#allocation5], %s562
          %564 = dma.done %s560, 512
        $region52: #{tpu_custom_call.1} parent=47 // pred_fallthru
          _
      $region48: #{tpu_custom_call.1} parent=5 // pred_fallthru
        _
    $region6: #{tpu_custom_call.1} parent=1 // loop_footer
      %s20 = sadd.s32 1, %s16
    $region7: #{tpu_custom_call.1} parent=1 // loop_footer_branch
      %15 = sbr.rel target = $region3
    $region8: #{tpu_custom_call.1} parent=1 // loop_exit
      _
    %565 = vsyncpa [#allocation3], 1
    %s566 = scalar_lea.sflag [#allocation3], 1
    %567 = vsyncpa %s566, 1
    %568 = vsyncpa [#allocation4], 1
    %s569 = scalar_lea.sflag [#allocation4], 1
    %570 = vsyncpa %s569, 1

</llo_original>
